<compile_context>
chip_gen: v7x
topology: tpu7x:2x2x1
jax: 0.10.0
libtpu: 0.0.40
codegen_flags: <defaults>
</compile_context>

<pallas_src>
import functools

import jax
import jax.numpy as jnp
import numpy as np
from jax.experimental import pallas as pl
from jax.experimental.pallas import tpu as pltpu


def _cross_attention_kernel(x_ref, w2_ref, bias_ref, out_ref, *, heads, n_pad):
    # x_ref: (tile_b, hin); w2_ref: (hin, heads*n_pad); bias_ref: (1, heads*n_pad)
    # Single fused matmul produces all heads' scores at once.
    s = jnp.dot(x_ref[...], w2_ref[...], preferred_element_type=jnp.float32)
    s = s + bias_ref[...]                                  # (tile_b, heads*n_pad)

    inv_h = 1.0 / float(heads)
    acc = None
    # Static unrolled loop over heads; each segment slice starts at a multiple
    # of 128 lanes -> clean vreg-group selection, no relayout.
    for hd in range(heads):
        seg = s[:, hd * n_pad:(hd + 1) * n_pad]            # (tile_b, n_pad)
        m = jnp.max(seg, axis=-1, keepdims=True)
        p = jnp.exp(seg - m)
        l = jnp.sum(p, axis=-1, keepdims=True)
        # Exact reciprocal keeps 1e-5 parity; 1/heads of the head-mean folded in.
        probs = p * (pl.reciprocal(l, approx=False) * inv_h)
        acc = probs if acc is None else acc + probs
    out_ref[...] = acc.astype(out_ref.dtype)
    # NOTE: if b is not a multiple of tile_b, padded rows of the last block hold
    # undefined data; their softmax may be garbage but those rows are discarded.


def _pick_tile_b(b, max_tile=512):
    if b <= 8:
        return b                      # full-array block (allowed by the (8,128) rule)
    # Multiple of 8; aim for >=2 grid steps so v7x can shard across TensorCores.
    t = (pl.cdiv(b, 2) + 7) // 8 * 8
    return max(8, min(t, max_tile))


def cross_attention(x, wq, keys_buf, values_buf, *, heads, emb, tile_b=None):
    """x: (b, input_size); wq: (heads*emb, input_size) [nn.Linear layout];
    keys_buf: (heads, n_episodes, emb) [identical per head];
    values_buf: (n_episodes,) [= offline_values.abs().mean(-1)]."""
    b, hin = x.shape
    h, n, e = keys_buf.shape
    assert h == heads and e == emb

    scale = 1.0 / (float(emb) ** 0.25)
    n_pad = ((n + 127) // 128) * 128                       # lane-dense scores/output

    # --- host-side algebraic fusion (layout + weight prep, not compute-hoisting
    #     of anything x-dependent): W2[i, (h, j)] = scale * sum_e Wq[h,e,i]*K[j,e]
    k_dedup = keys_buf[0]                                  # keys are repeated per head
    wq3 = wq.reshape(heads, emb, hin).astype(jnp.float32)
    w2 = scale * jnp.einsum('hei,ne->ihn', wq3, k_dedup.astype(jnp.float32))
    w2 = jnp.pad(w2, ((0, 0), (0, 0), (0, n_pad - n)))     # padded key cols are zero
    w2 = w2.reshape(hin, heads * n_pad)

    # `values` bias, repeated per head; padded columns get -1e30 so they carry
    # no softmax mass.
    bias1d = jnp.pad(values_buf.astype(jnp.float32), (0, n_pad - n),
                     constant_values=-1e30)
    bias = jnp.tile(bias1d, (heads,)).reshape(1, heads * n_pad)

    if tile_b is None:
        tile_b = _pick_tile_b(b)
    grid = (pl.cdiv(b, tile_b),)

    kernel = functools.partial(_cross_attention_kernel, heads=heads, n_pad=n_pad)
    out_padded = pl.pallas_call(
        kernel,
        out_shape=jax.ShapeDtypeStruct((b, n_pad), jnp.float32),
        grid=grid,
        in_specs=[
            pl.BlockSpec((tile_b, hin), lambda i: (i, 0)),
            pl.BlockSpec((hin, heads * n_pad), lambda i: (0, 0)),
            pl.BlockSpec((1, heads * n_pad), lambda i: (0, 0)),
        ],
        out_specs=pl.BlockSpec((tile_b, n_pad), lambda i: (i, 0)),
        compiler_params=pltpu.CompilerParams(
            dimension_semantics=("parallel",),
        ),
    )(x.astype(jnp.float32), w2, bias)

    return out_padded[:, :n]


def cross_attention_ref(x, wq, keys_buf, values_buf, *, heads, emb):
    b = x.shape[0]
    q = (x @ wq.T).reshape(b, heads, emb) / (float(emb) ** 0.25)
    dot = jnp.einsum('bhe,hne->bhn', q, keys_buf) + values_buf.reshape(1, 1, -1)
    dot = jax.nn.softmax(dot, axis=-1)
    return dot.mean(axis=1)


if __name__ == "__main__":
    # Small shapes consistent with the module's forward.
    batch = 2
    input_size = 32          # hin (no encoder -> actual_input_size == input_size)
    heads = 4
    embed_size = 8
    n_episodes = 16
    value_feat = 5           # raw offline_values last dim (reduced by abs().mean(-1))

    key = jax.random.PRNGKey(0)
    k_x, k_wq, k_keys, k_vals = jax.random.split(key, 4)

    x = jax.random.normal(k_x, (batch, input_size), dtype=jnp.float32)
    # nn.Linear(actual_input_size, emb*heads, bias=False).weight: (emb*heads, input_size)
    wq = jax.random.normal(k_wq, (embed_size * heads, input_size),
                           dtype=jnp.float32) * 0.1
    offline_keys = jax.random.normal(k_keys, (n_episodes, embed_size),
                                     dtype=jnp.float32)
    offline_values = jax.random.normal(k_vals, (n_episodes, value_feat),
                                       dtype=jnp.float32)

    # register_buffer('keys', offline_keys.unsqueeze(0).repeat(heads, 1, 1))
    keys_buf = jnp.broadcast_to(offline_keys[None, :, :],
                                (heads, n_episodes, embed_size))
    # register_buffer('values', offline_values.abs().mean(dim=-1))
    values_buf = jnp.abs(offline_values).mean(axis=-1)

    # The kernel dedupes keys via keys_buf[0]; assert the per-head repeat holds.
    np.testing.assert_allclose(np.asarray(keys_buf),
                               np.broadcast_to(np.asarray(keys_buf[0])[None],
                                               keys_buf.shape))

    out = cross_attention(x, wq, keys_buf, values_buf,
                          heads=heads, emb=embed_size)
    out = jax.block_until_ready(out)

    ref = cross_attention_ref(x, wq, keys_buf, values_buf,
                              heads=heads, emb=embed_size)
    np.testing.assert_allclose(np.asarray(out), np.asarray(ref),
                               rtol=1e-5, atol=1e-5)
    print("KERNEL_OK")
</pallas_src>

<mosaic_0001>
module attributes {stable_mosaic.version = 11 : i64} {
  func.func @_cross_attention_kernel(%arg0: i32, %arg1: memref<2x32xf32, #tpu.memory_space<vmem>>, %arg2: memref<32x512xf32, #tpu.memory_space<vmem>>, %arg3: memref<1x512xf32, #tpu.memory_space<vmem>>, %arg4: memref<2x128xf32, #tpu.memory_space<vmem>>) attributes {dimension_semantics = [#tpu.dimension_semantics<parallel>], iteration_bounds = array<i64: 1>, scalar_prefetch = 0 : i64, scratch_operands = 0 : i64, tpu.core_type = #tpu.core_type<tc>, window_params = [{transform_indices = @transform_0, window_bounds = array<i64: 2, 32>}, {pipeline_mode = #tpu.pipeline_mode<synchronous>, transform_indices = @transform_1, window_bounds = array<i64: 32, 512>}, {pipeline_mode = #tpu.pipeline_mode<synchronous>, transform_indices = @transform_2, window_bounds = array<i64: 1, 512>}, {transform_indices = @transform_3, window_bounds = array<i64: 2, 128>}]} {
    %c0 = arith.constant 0 : index
    %c0_0 = arith.constant 0 : index
    %0 = vector.load %arg1[%c0, %c0_0] : memref<2x32xf32, #tpu.memory_space<vmem>>, vector<2x32xf32>
    %c0_1 = arith.constant 0 : index
    %c0_2 = arith.constant 0 : index
    %1 = vector.load %arg2[%c0_1, %c0_2] : memref<32x512xf32, #tpu.memory_space<vmem>>, vector<32x512xf32>
    %cst = arith.constant dense<0.000000e+00> : vector<2x512xf32>
    %2 = tpu.matmul %0, %1, %cst {dimension_numbers = #tpu.dot_dimension_numbers<[1], [0], [0], [1], [0, 0, 1, 1], [], []>} : vector<2x32xf32>, vector<32x512xf32>, vector<2x512xf32> -> vector<2x512xf32>
    %c0_3 = arith.constant 0 : index
    %c0_4 = arith.constant 0 : index
    %3 = vector.load %arg3[%c0_3, %c0_4] : memref<1x512xf32, #tpu.memory_space<vmem>>, vector<1x512xf32>
    %4 = vector.broadcast %3 : vector<1x512xf32> to vector<2x512xf32>
    %5 = arith.addf %2, %4 : vector<2x512xf32>
    %6 = vector.extract_strided_slice %5 {offsets = [0, 0], sizes = [2, 128], strides = [1, 1]} : vector<2x512xf32> to vector<2x128xf32>
    %cst_5 = arith.constant dense<0xFF800000> : vector<2xf32>
    %7 = vector.multi_reduction <maximumf>, %6, %cst_5 [1] : vector<2x128xf32> to vector<2xf32>
    %8 = vector.shape_cast %7 : vector<2xf32> to vector<2x1xf32>
    %9 = vector.broadcast %8 : vector<2x1xf32> to vector<2x128xf32>
    %10 = arith.subf %6, %9 : vector<2x128xf32>
    %11 = math.exp %10 : vector<2x128xf32>
    %cst_6 = arith.constant dense<0.000000e+00> : vector<2xf32>
    %12 = vector.multi_reduction <add>, %11, %cst_6 [1] : vector<2x128xf32> to vector<2xf32>
    %13 = vector.shape_cast %12 : vector<2xf32> to vector<2x1xf32>
    %14 = tpu.reciprocal %13 : vector<2x1xf32> -> vector<2x1xf32>
    %cst_7 = arith.constant 2.500000e-01 : f32
    %15 = vector.broadcast %cst_7 : f32 to vector<2x1xf32>
    %16 = arith.mulf %14, %15 : vector<2x1xf32>
    %17 = vector.broadcast %16 : vector<2x1xf32> to vector<2x128xf32>
    %18 = arith.mulf %11, %17 : vector<2x128xf32>
    %19 = vector.extract_strided_slice %5 {offsets = [0, 128], sizes = [2, 128], strides = [1, 1]} : vector<2x512xf32> to vector<2x128xf32>
    %cst_8 = arith.constant dense<0xFF800000> : vector<2xf32>
    %20 = vector.multi_reduction <maximumf>, %19, %cst_8 [1] : vector<2x128xf32> to vector<2xf32>
    %21 = vector.shape_cast %20 : vector<2xf32> to vector<2x1xf32>
    %22 = vector.broadcast %21 : vector<2x1xf32> to vector<2x128xf32>
    %23 = arith.subf %19, %22 : vector<2x128xf32>
    %24 = math.exp %23 : vector<2x128xf32>
    %cst_9 = arith.constant dense<0.000000e+00> : vector<2xf32>
    %25 = vector.multi_reduction <add>, %24, %cst_9 [1] : vector<2x128xf32> to vector<2xf32>
    %26 = vector.shape_cast %25 : vector<2xf32> to vector<2x1xf32>
    %27 = tpu.reciprocal %26 : vector<2x1xf32> -> vector<2x1xf32>
    %cst_10 = arith.constant 2.500000e-01 : f32
    %28 = vector.broadcast %cst_10 : f32 to vector<2x1xf32>
    %29 = arith.mulf %27, %28 : vector<2x1xf32>
    %30 = vector.broadcast %29 : vector<2x1xf32> to vector<2x128xf32>
    %31 = arith.mulf %24, %30 : vector<2x128xf32>
    %32 = arith.addf %18, %31 : vector<2x128xf32>
    %33 = vector.extract_strided_slice %5 {offsets = [0, 256], sizes = [2, 128], strides = [1, 1]} : vector<2x512xf32> to vector<2x128xf32>
    %cst_11 = arith.constant dense<0xFF800000> : vector<2xf32>
    %34 = vector.multi_reduction <maximumf>, %33, %cst_11 [1] : vector<2x128xf32> to vector<2xf32>
    %35 = vector.shape_cast %34 : vector<2xf32> to vector<2x1xf32>
    %36 = vector.broadcast %35 : vector<2x1xf32> to vector<2x128xf32>
    %37 = arith.subf %33, %36 : vector<2x128xf32>
    %38 = math.exp %37 : vector<2x128xf32>
    %cst_12 = arith.constant dense<0.000000e+00> : vector<2xf32>
    %39 = vector.multi_reduction <add>, %38, %cst_12 [1] : vector<2x128xf32> to vector<2xf32>
    %40 = vector.shape_cast %39 : vector<2xf32> to vector<2x1xf32>
    %41 = tpu.reciprocal %40 : vector<2x1xf32> -> vector<2x1xf32>
    %cst_13 = arith.constant 2.500000e-01 : f32
    %42 = vector.broadcast %cst_13 : f32 to vector<2x1xf32>
    %43 = arith.mulf %41, %42 : vector<2x1xf32>
    %44 = vector.broadcast %43 : vector<2x1xf32> to vector<2x128xf32>
    %45 = arith.mulf %38, %44 : vector<2x128xf32>
    %46 = arith.addf %32, %45 : vector<2x128xf32>
    %47 = vector.extract_strided_slice %5 {offsets = [0, 384], sizes = [2, 128], strides = [1, 1]} : vector<2x512xf32> to vector<2x128xf32>
    %cst_14 = arith.constant dense<0xFF800000> : vector<2xf32>
    %48 = vector.multi_reduction <maximumf>, %47, %cst_14 [1] : vector<2x128xf32> to vector<2xf32>
    %49 = vector.shape_cast %48 : vector<2xf32> to vector<2x1xf32>
    %50 = vector.broadcast %49 : vector<2x1xf32> to vector<2x128xf32>
    %51 = arith.subf %47, %50 : vector<2x128xf32>
    %52 = math.exp %51 : vector<2x128xf32>
    %cst_15 = arith.constant dense<0.000000e+00> : vector<2xf32>
    %53 = vector.multi_reduction <add>, %52, %cst_15 [1] : vector<2x128xf32> to vector<2xf32>
    %54 = vector.shape_cast %53 : vector<2xf32> to vector<2x1xf32>
    %55 = tpu.reciprocal %54 : vector<2x1xf32> -> vector<2x1xf32>
    %cst_16 = arith.constant 2.500000e-01 : f32
    %56 = vector.broadcast %cst_16 : f32 to vector<2x1xf32>
    %57 = arith.mulf %55, %56 : vector<2x1xf32>
    %58 = vector.broadcast %57 : vector<2x1xf32> to vector<2x128xf32>
    %59 = arith.mulf %52, %58 : vector<2x128xf32>
    %60 = arith.addf %46, %59 : vector<2x128xf32>
    %c0_17 = arith.constant 0 : index
    %c0_18 = arith.constant 0 : index
    %61 = vector.load %arg4[%c0_17, %c0_18] : memref<2x128xf32, #tpu.memory_space<vmem>>, vector<2x128xf32>
    tpu.vector_store %arg4[%c0_17, %c0_18], %60 {strides = array<i32>} : memref<2x128xf32, #tpu.memory_space<vmem>>, vector<2x128xf32>,
    return
  }
  func.func @transform_0(%arg0: i32) -> (i32, i32) {
    %c0_i32 = arith.constant 0 : i32
    %c0_i32_0 = arith.constant 0 : i32
    return %arg0, %c0_i32 : i32, i32
  }
  func.func @transform_1(%arg0: i32) -> (i32, i32) {
    %c0_i32 = arith.constant 0 : i32
    %c0_i32_0 = arith.constant 0 : i32
    %c0_i32_1 = arith.constant 0 : i32
    return %c0_i32, %c0_i32_0 : i32, i32
  }
  func.func @transform_2(%arg0: i32) -> (i32, i32) {
    %c0_i32 = arith.constant 0 : i32
    %c0_i32_0 = arith.constant 0 : i32
    %c0_i32_1 = arith.constant 0 : i32
    return %c0_i32, %c0_i32_0 : i32, i32
  }
  func.func @transform_3(%arg0: i32) -> (i32, i32) {
    %c0_i32 = arith.constant 0 : i32
    %c0_i32_0 = arith.constant 0 : i32
    return %arg0, %c0_i32 : i32, i32
  }
}

</mosaic_0001>

<llo_original>
// kernel: tpu_custom_call.1
$region0: #{tpu_custom_call.1}
  #allocation0 [shape = 'u32[]', space=smem, size = 0x4, offset = 0x4, fixed_abs, tag = 'smem constant byte address 0x4 - core index']
  #allocation1 [shape = 'u32[144,128]{1,0:T(1,128)}', space=vmem, size = 0x12000, scoped, tag = 'internal scratch']
  %s0 = inlined_call_operand.hbm [shape: f32[2,32], index: 0, kind: input, shape index: {}]
  %s1 = inlined_call_operand.hbm [shape: f32[32,512], index: 1, kind: input, shape index: {}]
  %s2 = inlined_call_operand.vmem [shape: f32[1,512], index: 2, kind: input, shape index: {}]
  %s3 = inlined_call_operand.hbm [shape: f32[2,128], index: 3, kind: output, shape index: {}]
  %s4 = sld [smem:[#allocation0]]
  $region30: #{tpu_custom_call.1} parent=0
    _
  %s6 = ssub.s32 1, %s4
  %s7 = scalar_select 0, %s6, %s4
  $region1: #{tpu_custom_call.1} parent=0
    #allocation2 [shape = 'u8[1024]{0}', space=vmem, size = 0x400, scoped, tag = 'input window, operand 0, single buffered']
    #allocation3 [shape = 's32[1]{0}', space=sflag, size = 0x4, scoped, tag = 'scoped memory for tpu_custom_call.1']
    #allocation4 [shape = 's32[1]{0}', space=sflag, size = 0x4, scoped, tag = 'scoped memory for tpu_custom_call.1']
    #allocation5 [shape = 'u8[65536]{0}', space=vmem, size = 0x10000, scoped, tag = 'input window, operand 1, single buffered']
    #allocation6 [shape = 's32[1]{0}', space=sflag, size = 0x4, scoped, tag = 'scoped memory for tpu_custom_call.1']
    #allocation7 [shape = 'u8[1024]{0}', space=vmem, size = 0x400, scoped, tag = 'output window, operand 0, single buffered']
    %8 = vsyncpa [#allocation3], 0
    %9 = vsyncpa [#allocation6], 0
    %10 = vsyncpa [#allocation4], 0
    // Predicated region
    $region2: #{tpu_custom_call.1} parent=1 // pred_check
      _
    $region3: #{tpu_custom_call.1} parent=1 // pred_check_branch
      %12 = sbr.rel (0) target = $region5
    $region4: #{tpu_custom_call.1} parent=1 // pred_region
      %s14 = ssub.s32 32, 32
      %15 = vsyncadd [#allocation3], %s14
      %s17 = sshll.u32 [#allocation2], 4
      %s18 = int_to_ptr.vmem [resolvable:$true] %s17
      %20 = dma.hbm_to_vmem [thread:$0]  %s0, 32, %s18, [#allocation3]
    $region5: #{tpu_custom_call.1} parent=1 // pred_fallthru
      _
    // Predicated region
    $region6: #{tpu_custom_call.1} parent=1 // pred_check
      _
    $region7: #{tpu_custom_call.1} parent=1 // pred_check_branch
      %22 = sbr.rel (0) target = $region9
    $region8: #{tpu_custom_call.1} parent=1 // pred_region
      %s24 = ssub.s32 2048, 2048
      %25 = vsyncadd [#allocation6], %s24
      %s26 = sshll.u32 [#allocation5], 4
      %s27 = int_to_ptr.vmem [resolvable:$true] %s26
      %32 = dma.hbm_to_vmem [thread:$0]  %s1, 2048, %s27, [#allocation6], 512, 512, 32
    $region9: #{tpu_custom_call.1} parent=1 // pred_fallthru
      _
    // Predicated region
    $region10: #{tpu_custom_call.1} parent=1 // pred_check
      _
    $region11: #{tpu_custom_call.1} parent=1 // pred_check_branch
      %34 = sbr.rel (0) target = $region13
    $region12: #{tpu_custom_call.1} parent=1 // pred_region
      _
    $region13: #{tpu_custom_call.1} parent=1 // pred_fallthru
      _
    // Predicated region
    $region14: #{tpu_custom_call.1} parent=1 // pred_check
      _
    $region15: #{tpu_custom_call.1} parent=1 // pred_check_branch
      %36 = sbr.rel (0) target = $region17
    $region16: #{tpu_custom_call.1} parent=1 // pred_region
      %37 = dma.done [#allocation3], 32
    $region17: #{tpu_custom_call.1} parent=1 // pred_fallthru
      _
    // Predicated region
    $region18: #{tpu_custom_call.1} parent=1 // pred_check
      _
    $region19: #{tpu_custom_call.1} parent=1 // pred_check_branch
      %39 = sbr.rel (0) target = $region21
    $region20: #{tpu_custom_call.1} parent=1 // pred_region
      %40 = dma.done [#allocation6], 2048
    $region21: #{tpu_custom_call.1} parent=1 // pred_fallthru
      _
    %v41 = vld [vmem:[#allocation2] sm:$0x3]
    %v42 = vld [vmem:[#allocation5] sm:$0xff]
    %v43 = vld [vmem:[#allocation5 + $0x8] sm:$0xff]
    %v44 = vld [vmem:[#allocation5 + $0x10] sm:$0xff]
    %v45 = vld [vmem:[#allocation5 + $0x18] sm:$0xff]
    %v46 = vld [vmem:[#allocation5 + $0x20] sm:$0xff]
    %v47 = vld [vmem:[#allocation5 + $0x28] sm:$0xff]
    %v48 = vld [vmem:[#allocation5 + $0x30] sm:$0xff]
    %v49 = vld [vmem:[#allocation5 + $0x38] sm:$0xff]
    %v50 = vld [vmem:[#allocation5 + $0x40] sm:$0xff]
    %v51 = vld [vmem:[#allocation5 + $0x48] sm:$0xff]
    %v52 = vld [vmem:[#allocation5 + $0x50] sm:$0xff]
    %v53 = vld [vmem:[#allocation5 + $0x58] sm:$0xff]
    %v54 = vld [vmem:[#allocation5 + $0x60] sm:$0xff]
    %v55 = vld [vmem:[#allocation5 + $0x68] sm:$0xff]
    %v56 = vld [vmem:[#allocation5 + $0x70] sm:$0xff]
    %v57 = vld [vmem:[#allocation5 + $0x78] sm:$0xff]
    %v58 = vld [vmem:[%s2] sm:$0xf]
    %v60 = vlaneseq
    %v61 = vshrl.u32 %v60, 7
    %v62 = vsub.s32 0, %v61
    %v63 = vrot.slane %v58, %v62
    %v64 = vlaneseq
    %v65 = vshrl.u32 %v64, 7
    %v66 = vsub.s32 1, %v65
    %v67 = vrot.slane %v58, %v66
    %v68 = vlaneseq
    %v69 = vshrl.u32 %v68, 7
    %v70 = vsub.s32 2, %v69
    %v71 = vrot.slane %v58, %v70
    %v72 = vlaneseq
    %v73 = vshrl.u32 %v72, 7
    %v74 = vsub.s32 3, %v73
    %v75 = vrot.slane %v58, %v74
    %vm80 = vcmask 261120
    %v82 = vsel %vm80, %v41, 0
    %84 = vmatprep.subr.mxu0 %v43
    %85 = vmatpush1.msra.mxu0 %v42
    %86 = vmatprep.subr.mxu0 %v47
    %87 = vmatpush1.msra.mxu0 %v46
    %88 = vmatprep.subr.mxu0 %v51
    %89 = vmatpush1.msra.mxu0 %v50
    %90 = vmatprep.subr.mxu0 %v55
    %91 = vmatpush1.msra.mxu0 %v54
    %92 = vmatprep.subr.mxu0 0.0
    %93 = vmatpush1.msra.mxu0 0.0
    %94 = vmatprep.subr.mxu0 0.0
    %95 = vmatpush1.msra.mxu0 0.0
    %96 = vmatprep.subr.mxu0 0.0
    %97 = vmatpush1.msra.mxu0 0.0
    %98 = vmatprep.subr.mxu0 0.0
    %99 = vmatpush1.msra.mxu0 0.0
    %100 = vmatprep.subr.mxu0 0.0
    %101 = vmatpush1.msra.mxu0 0.0
    %102 = vmatprep.subr.mxu0 0.0
    %103 = vmatpush1.msra.mxu0 0.0
    %104 = vmatprep.subr.mxu0 0.0
    %105 = vmatpush1.msra.mxu0 0.0
    %106 = vmatprep.subr.mxu0 0.0
    %107 = vmatpush1.msra.mxu0 0.0
    %108 = vmatprep.subr.mxu0 0.0
    %109 = vmatpush1.msra.mxu0 0.0
    %110 = vmatprep.subr.mxu0 0.0
    %111 = vmatpush1.msra.mxu0 0.0
    %112 = vmatprep.subr.mxu0 0.0
    %113 = vmatpush1.msra.mxu0 0.0
    %114 = vmatprep.subr.mxu0 0.0
    %115 = vmatpush1.msra.mxu0 0.0
    %116 = vmatprep.subr.mxu0 0.0
    %117 = vmatpush1.msra.mxu0 0.0
    %118 = vmatprep.subr.mxu0 0.0
    %119 = vmatpush1.msra.mxu0 0.0
    %120 = vmatprep.subr.mxu0 0.0
    %121 = vmatpush1.msra.mxu0 0.0
    %122 = vmatprep.subr.mxu0 0.0
    %123 = vmatpush1.msra.mxu0 0.0
    %124 = vmatprep.subr.mxu0 0.0
    %125 = vmatpush1.msra.mxu0 0.0
    %126 = vmatprep.subr.mxu0 0.0
    %127 = vmatpush1.msra.mxu0 0.0
    %128 = vmatprep.subr.mxu0 0.0
    %129 = vmatpush1.msra.mxu0 0.0
    %130 = vmatprep.subr.mxu0 0.0
    %131 = vmatpush1.msra.mxu0 0.0
    %132 = vmatprep.subr.mxu0 0.0
    %133 = vmatpush1.msra.mxu0 0.0
    %134 = vmatprep.subr.mxu0 0.0
    %135 = vmatpush1.msra.mxu0 0.0
    %136 = vmatprep.subr.mxu0 0.0
    %137 = vmatpush1.msra.mxu0 0.0
    %138 = vmatprep.subr.mxu0 0.0
    %139 = vmatpush1.msra.mxu0 0.0
    %140 = vmatprep.subr.mxu0 0.0
    %141 = vmatpush1.msra.mxu0 0.0
    %142 = vmatprep.subr.mxu0 0.0
    %143 = vmatpush1.msra.mxu0 0.0
    %144 = vmatprep.subr.mxu0 0.0
    %145 = vmatpush1.msra.mxu0 0.0
    %146 = vmatprep.subr.mxu0 0.0
    %147 = vmatpush1.msra.mxu0 0.0
    %148 = vmatprep.mubr.f32.mxu0 0.0
    %149 = vmatmul.mubr.f32.gmra.mrb[0].mxu0 %v82
    %v150 = vpop.f32.mrb[0].mxu0
    %v151 = vadd.f32 %v63, %v150
    %v152 = vpop.f32.mrb[0].mxu0
    %v153 = vadd.f32 %v67, %v152
    %154 = vdwg.mxu0
    %155 = vmatprep.subr.mxu0 %v45
    %156 = vmatpush1.msra.mxu0 %v44
    %157 = vmatprep.subr.mxu0 %v49
    %158 = vmatpush1.msra.mxu0 %v48
    %159 = vmatprep.subr.mxu0 %v53
    %160 = vmatpush1.msra.mxu0 %v52
    %161 = vmatprep.subr.mxu0 %v57
    %162 = vmatpush1.msra.mxu0 %v56
    %163 = vmatprep.subr.mxu0 0.0
    %164 = vmatpush1.msra.mxu0 0.0
    %165 = vmatprep.subr.mxu0 0.0
    %166 = vmatpush1.msra.mxu0 0.0
    %167 = vmatprep.subr.mxu0 0.0
    %168 = vmatpush1.msra.mxu0 0.0
    %169 = vmatprep.subr.mxu0 0.0
    %170 = vmatpush1.msra.mxu0 0.0
    %171 = vmatprep.subr.mxu0 0.0
    %172 = vmatpush1.msra.mxu0 0.0
    %173 = vmatprep.subr.mxu0 0.0
    %174 = vmatpush1.msra.mxu0 0.0
    %175 = vmatprep.subr.mxu0 0.0
    %176 = vmatpush1.msra.mxu0 0.0
    %177 = vmatprep.subr.mxu0 0.0
    %178 = vmatpush1.msra.mxu0 0.0
    %179 = vmatprep.subr.mxu0 0.0
    %180 = vmatpush1.msra.mxu0 0.0
    %181 = vmatprep.subr.mxu0 0.0
    %182 = vmatpush1.msra.mxu0 0.0
    %183 = vmatprep.subr.mxu0 0.0
    %184 = vmatpush1.msra.mxu0 0.0
    %185 = vmatprep.subr.mxu0 0.0
    %186 = vmatpush1.msra.mxu0 0.0
    %187 = vmatprep.subr.mxu0 0.0
    %188 = vmatpush1.msra.mxu0 0.0
    %189 = vmatprep.subr.mxu0 0.0
    %190 = vmatpush1.msra.mxu0 0.0
    %191 = vmatprep.subr.mxu0 0.0
    %192 = vmatpush1.msra.mxu0 0.0
    %193 = vmatprep.subr.mxu0 0.0
    %194 = vmatpush1.msra.mxu0 0.0
    %195 = vmatprep.subr.mxu0 0.0
    %196 = vmatpush1.msra.mxu0 0.0
    %197 = vmatprep.subr.mxu0 0.0
    %198 = vmatpush1.msra.mxu0 0.0
    %199 = vmatprep.subr.mxu0 0.0
    %200 = vmatpush1.msra.mxu0 0.0
    %201 = vmatprep.subr.mxu0 0.0
    %202 = vmatpush1.msra.mxu0 0.0
    %203 = vmatprep.subr.mxu0 0.0
    %204 = vmatpush1.msra.mxu0 0.0
    %205 = vmatprep.subr.mxu0 0.0
    %206 = vmatpush1.msra.mxu0 0.0
    %207 = vmatprep.subr.mxu0 0.0
    %208 = vmatpush1.msra.mxu0 0.0
    %209 = vmatprep.subr.mxu0 0.0
    %210 = vmatpush1.msra.mxu0 0.0
    %211 = vmatprep.subr.mxu0 0.0
    %212 = vmatpush1.msra.mxu0 0.0
    %213 = vmatprep.subr.mxu0 0.0
    %214 = vmatpush1.msra.mxu0 0.0
    %215 = vmatprep.subr.mxu0 0.0
    %216 = vmatpush1.msra.mxu0 0.0
    %217 = vmatprep.subr.mxu0 0.0
    %218 = vmatpush1.msra.mxu0 0.0
    %219 = vmatprep.mubr.f32.mxu0 0.0
    %220 = vmatmul.mubr.f32.gmra.mrb[0].mxu0 %v82
    %v221 = vpop.f32.mrb[0].mxu0
    %v222 = vadd.f32 %v71, %v221
    %v223 = vpop.f32.mrb[0].mxu0
    %v224 = vadd.f32 %v75, %v223
    %225 = vdwg.mxu0
    %vm226 = vcmask 1041408
    %v227 = vsel %vm226, %v151, -inf
    %228 = vmax.xlane.f32.xlu0 %v227
    %v229 = vpop.xlane.xlu0 %228
    %v230 = vsub.f32 %v151, %v229
    %v231 = vmul.f32 %v230, 1.442695
    %v232 = vpow.pop %v231
    %v233 = vsel %vm226, %v232, 0.0
    %234 = vadd.xlane.f32.xlu0 %v233
    %v235 = vpop.xlane.xlu0 %234
    %v236 = vrcp.pop %v235
    %v237 = vmul.f32 %v236, 0.25
    %v238 = vmul.f32 %v232, %v237
    %v239 = vsel %vm226, %v153, -inf
    %240 = vmax.xlane.f32.xlu0 %v239
    %v241 = vpop.xlane.xlu0 %240
    %v242 = vsub.f32 %v153, %v241
    %v243 = vmul.f32 %v242, 1.442695
    %v244 = vpow.pop %v243
    %v245 = vsel %vm226, %v244, 0.0
    %246 = vadd.xlane.f32.xlu0 %v245
    %v247 = vpop.xlane.xlu0 %246
    %v248 = vrcp.pop %v247
    %v249 = vmul.f32 %v248, 0.25
    %v250 = vmul.f32 %v244, %v249
    %v251 = vadd.f32 %v238, %v250
    %v252 = vsel %vm226, %v222, -inf
    %253 = vmax.xlane.f32.xlu0 %v252
    %v254 = vpop.xlane.xlu0 %253
    %v255 = vsub.f32 %v222, %v254
    %v256 = vmul.f32 %v255, 1.442695
    %v257 = vpow.pop %v256
    %v258 = vsel %vm226, %v257, 0.0
    %259 = vadd.xlane.f32.xlu0 %v258
    %v260 = vpop.xlane.xlu0 %259
    %v261 = vrcp.pop %v260
    %v262 = vmul.f32 %v261, 0.25
    %v263 = vmul.f32 %v257, %v262
    %v264 = vadd.f32 %v251, %v263
    %v265 = vsel %vm226, %v224, -inf
    %266 = vmax.xlane.f32.xlu0 %v265
    %v267 = vpop.xlane.xlu0 %266
    %v268 = vsub.f32 %v224, %v267
    %v269 = vmul.f32 %v268, 1.442695
    %v270 = vpow.pop %v269
    %v271 = vsel %vm226, %v270, 0.0
    %272 = vadd.xlane.f32.xlu0 %v271
    %v273 = vpop.xlane.xlu0 %272
    %v274 = vrcp.pop %v273
    %v275 = vmul.f32 %v274, 0.25
    %v276 = vmul.f32 %v270, %v275
    %v277 = vadd.f32 %v264, %v276
    %278 = vst [vmem:[#allocation7] sm:$0x3] %v277
    // Predicated region
    $region22: #{tpu_custom_call.1} parent=1 // pred_check
      _
    $region23: #{tpu_custom_call.1} parent=1 // pred_check_branch
      %280 = sbr.rel (0) target = $region25
    $region24: #{tpu_custom_call.1} parent=1 // pred_region
      %s282 = ssub.s32 32, 32
      %283 = vsyncadd [#allocation4], %s282
      %s285 = sshll.u32 [#allocation7], 4
      %s286 = int_to_ptr.vmem [resolvable:$true] %s285
      %288 = dma.vmem_to_hbm [thread:$0]  %s286, 32, %s3, [#allocation4]
    $region25: #{tpu_custom_call.1} parent=1 // pred_fallthru
      _
    // Predicated region
    $region26: #{tpu_custom_call.1} parent=1 // pred_check
      _
    $region27: #{tpu_custom_call.1} parent=1 // pred_check_branch
      %290 = sbr.rel (0) target = $region29
    $region28: #{tpu_custom_call.1} parent=1 // pred_region
      %291 = dma.done [#allocation4], 32
    $region29: #{tpu_custom_call.1} parent=1 // pred_fallthru
      _
    %292 = vsyncpa [#allocation3], 1
    %293 = vsyncpa [#allocation6], 1
    %294 = vsyncpa [#allocation4], 1

</llo_original>
